<compile_context>
chip_gen: v5e
topology: v5e:2x2
jax: 0.10.0
libtpu: 0.0.40
codegen_flags: <defaults>
</compile_context>

<pallas_src>
import jax
import jax.numpy as jnp
from jax import lax
from jax.experimental import pallas as pl
from jax.experimental.pallas import tpu as pltpu


def _round_up(x, m):
    return ((x + m - 1) // m) * m


def _pad_to(a, shape):
    pads = [(0, t - s) for s, t in zip(a.shape, shape)]
    if all(p == (0, 0) for p in pads):
        return a
    return jnp.pad(a, pads)


# --------------------------------------------------------------------------
# Kernels
# --------------------------------------------------------------------------
def _w2v_dense_kernel(x_ref, w_ref, wt_ref, o_ref, hid_ref):
    # x_ref  : (TB, V)   batch tile of X (constant block across the voc-tile axis)
    # w_ref  : (V, E)    full input-embedding matrix (VMEM resident)
    # wt_ref : (E, TV)   voc tile of the output-embedding matrix
    # o_ref  : (TB, TV)  logits tile
    # hid_ref: (TB, E)   f32 hidden-layer scratch, reused across voc tiles
    @pl.when(pl.program_id(1) == 0)
    def _():
        hid_ref[...] = jnp.dot(x_ref[...], w_ref[...],
                               preferred_element_type=jnp.float32)

    o_ref[...] = jnp.dot(hid_ref[...].astype(wt_ref.dtype), wt_ref[...],
                         preferred_element_type=jnp.float32).astype(o_ref.dtype)


def _w2v_gather_kernel(idx_ref, w_ref, wt_ref, o_ref, hid_ref):
    # idx_ref: (PB,) int32 context-word indices, scalar-prefetched into SMEM
    # w_ref  : (V, E)    full input-embedding matrix (VMEM resident)
    # wt_ref : (E, TV)   voc tile of the output-embedding matrix
    # o_ref  : (TB, TV)  logits tile
    # hid_ref: (TB, E)   f32 scratch holding the gathered embedding rows
    i = pl.program_id(0)
    tile_batch = hid_ref.shape[0]

    # Gather the embedding rows once per batch tile (X @ W for one-hot X).
    @pl.when(pl.program_id(1) == 0)
    def _():
        def gather_row(r, carry):
            row = idx_ref[i * tile_batch + r]
            hid_ref[pl.ds(r, 1), :] = w_ref[pl.ds(row, 1), :].astype(jnp.float32)
            return carry

        lax.fori_loop(0, tile_batch, gather_row, 0)

    o_ref[...] = jnp.dot(hid_ref[...].astype(wt_ref.dtype), wt_ref[...],
                         preferred_element_type=jnp.float32).astype(o_ref.dtype)


# --------------------------------------------------------------------------
# Wrappers
# --------------------------------------------------------------------------
def word2vec_forward(x, w, wt, *, tile_batch=256, tile_v=512, compute_dtype=None,
                     single_buffer_weights=False,
                     vmem_limit_bytes=32 * 1024 * 1024):
    """out = (x @ w) @ wt with a fused Pallas TPU kernel (general dense X)."""
    batch, voc = x.shape
    voc_w, emb = w.shape
    emb_t, voc_t = wt.shape
    assert voc == voc_w and emb == emb_t and voc == voc_t
    out_dtype = x.dtype
    if compute_dtype is None:
        compute_dtype = x.dtype

    # Padded / tiled sizes (f32 sublane = 8, lane = 128).
    pb = _round_up(batch, 8)
    tile_batch = min(_round_up(tile_batch, 8), pb)
    pb = _round_up(pb, tile_batch)

    pv = _round_up(voc, 128)
    tile_v = min(_round_up(tile_v, 128), pv)
    pv = _round_up(pv, tile_v)

    pe = _round_up(emb, 128)

    x_p = _pad_to(x, (pb, pv)).astype(compute_dtype)
    w_p = _pad_to(w, (pv, pe)).astype(compute_dtype)
    wt_p = _pad_to(wt, (pe, pv)).astype(compute_dtype)

    grid = (pb // tile_batch, pv // tile_v)
    # Resident W never changes block index; single-buffering halves its VMEM
    # footprint (most valuable on v7x's 64 MiB VMEM).
    w_kwargs = dict(pipeline_mode=pl.Buffered(1)) if single_buffer_weights else {}

    out = pl.pallas_call(
        _w2v_dense_kernel,
        out_shape=jax.ShapeDtypeStruct((pb, pv), out_dtype),
        grid_spec=pltpu.PrefetchScalarGridSpec(
            num_scalar_prefetch=0,
            grid=grid,
            in_specs=[
                pl.BlockSpec((tile_batch, pv), lambda i, j: (i, 0)),       # X batch tile
                pl.BlockSpec((pv, pe), lambda i, j: (0, 0), **w_kwargs),   # W (resident)
                pl.BlockSpec((pe, tile_v), lambda i, j: (0, j)),           # WT voc tile
            ],
            out_specs=pl.BlockSpec((tile_batch, tile_v), lambda i, j: (i, j)),
            scratch_shapes=[pltpu.VMEM((tile_batch, pe), jnp.float32)],
        ),
        compiler_params=pltpu.CompilerParams(
            dimension_semantics=("parallel", "arbitrary"),
            vmem_limit_bytes=vmem_limit_bytes,
        ),
    )(x_p, w_p, wt_p)
    return out[:batch, :voc]


def word2vec_forward_onehot(idx, w, wt, *, tile_batch=256, tile_v=512,
                            compute_dtype=None, single_buffer_weights=False,
                            vmem_limit_bytes=32 * 1024 * 1024):
    """Skip-gram fast path: out[b] = W[idx[b]] @ WT (X is one-hot rows idx)."""
    (batch,) = idx.shape
    voc, emb = w.shape
    emb_t, voc_t = wt.shape
    assert emb == emb_t and voc == voc_t
    out_dtype = w.dtype
    if compute_dtype is None:
        compute_dtype = w.dtype

    pb = _round_up(batch, 8)
    tile_batch = min(_round_up(tile_batch, 8), pb)
    pb = _round_up(pb, tile_batch)

    pv = _round_up(voc, 128)
    tile_v = min(_round_up(tile_v, 128), pv)
    pv = _round_up(pv, tile_v)

    pe = _round_up(emb, 128)
    pvr = _round_up(voc, 8)                                  # sublane-pad W rows

    idx_p = _pad_to(idx.astype(jnp.int32), (pb,))            # padded rows gather row 0 (sliced off)
    w_p = _pad_to(w, (pvr, pe)).astype(compute_dtype)        # W resident; rows indexed dynamically
    wt_p = _pad_to(wt, (pe, pv)).astype(compute_dtype)

    grid = (pb // tile_batch, pv // tile_v)
    w_kwargs = dict(pipeline_mode=pl.Buffered(1)) if single_buffer_weights else {}

    out = pl.pallas_call(
        _w2v_gather_kernel,
        out_shape=jax.ShapeDtypeStruct((pb, pv), out_dtype),
        grid_spec=pltpu.PrefetchScalarGridSpec(
            num_scalar_prefetch=1,                           # idx -> SMEM
            grid=grid,
            in_specs=[
                pl.BlockSpec((pvr, pe), lambda i, j, idx_ref: (0, 0), **w_kwargs),
                pl.BlockSpec((pe, tile_v), lambda i, j, idx_ref: (0, j)),
            ],
            out_specs=pl.BlockSpec((tile_batch, tile_v), lambda i, j, idx_ref: (i, j)),
            scratch_shapes=[pltpu.VMEM((tile_batch, pe), jnp.float32)],
        ),
        compiler_params=pltpu.CompilerParams(
            dimension_semantics=("parallel", "arbitrary"),
            vmem_limit_bytes=vmem_limit_bytes,
        ),
    )(idx_p, w_p, wt_p)
    return out[:batch, :voc]


# --------------------------------------------------------------------------
# Demo / correctness check (small shapes; exercises padding + multi-tile grid)
# --------------------------------------------------------------------------
if __name__ == "__main__":
    batch = 32
    voc_size = 192          # not a multiple of 128 -> exercises lane padding
    embedding_size = 48     # padded to 128
    dtype = jnp.float32

    key = jax.random.PRNGKey(0)
    kx, kw, kwt, ki = jax.random.split(key, 4)

    # PyTorch init: -2 * rand(...) + 1  ->  uniform in (-1, 1]
    W = jax.random.uniform(kw, (voc_size, embedding_size),
                           dtype=dtype, minval=-1.0, maxval=1.0)
    WT = jax.random.uniform(kwt, (embedding_size, voc_size),
                            dtype=dtype, minval=-1.0, maxval=1.0)

    # 1) General dense X (exact module semantics: out = (X @ W) @ WT).
    #    tile_batch=16, tile_v=128 -> grid (2, 2): exercises hidden-scratch reuse.
    X_dense = jax.random.uniform(kx, (batch, voc_size),
                                 dtype=dtype, minval=-1.0, maxval=1.0)
    out_dense = jax.block_until_ready(
        word2vec_forward(X_dense, W, WT, tile_batch=16, tile_v=128))
    ref_dense = (X_dense @ W) @ WT
    assert out_dense.shape == (batch, voc_size)
    assert jnp.allclose(out_dense, ref_dense, atol=0.5, rtol=2e-2)

    # 2) Skip-gram one-hot fast path: int32 indices + in-kernel gather of W rows.
    idx = jax.random.randint(ki, (batch,), 0, voc_size)
    X_onehot = jax.nn.one_hot(idx, voc_size, dtype=dtype)
    ref_onehot = (X_onehot @ W) @ WT

    out_gather = jax.block_until_ready(
        word2vec_forward_onehot(idx, W, WT, tile_batch=16, tile_v=128))
    assert out_gather.shape == (batch, voc_size)
    assert jnp.allclose(out_gather, ref_onehot, atol=0.1, rtol=2e-2)

    # 3) bf16 compute (MXU-friendly) with f32 accumulation on the dense path.
    out_bf16 = jax.block_until_ready(
        word2vec_forward(X_onehot, W, WT, tile_batch=16, tile_v=128,
                         compute_dtype=jnp.bfloat16))
    assert jnp.allclose(out_bf16.astype(jnp.float32), ref_onehot,
                        atol=0.3, rtol=5e-2)

    print("KERNEL_OK")
</pallas_src>

<mosaic_0001>
module attributes {stable_mosaic.version = 11 : i64} {
  func.func @_w2v_dense_kernel(%arg0: i32, %arg1: i32, %arg2: memref<16x256xf32, #tpu.memory_space<vmem>>, %arg3: memref<256x128xf32, #tpu.memory_space<vmem>>, %arg4: memref<128x128xf32, #tpu.memory_space<vmem>>, %arg5: memref<16x128xf32, #tpu.memory_space<vmem>>, %arg6: memref<16x128xf32, #tpu.memory_space<vmem>>) attributes {dimension_semantics = [#tpu.dimension_semantics<parallel>, #tpu.dimension_semantics<arbitrary>], iteration_bounds = array<i64: 2, 2>, scalar_prefetch = 0 : i64, scratch_operands = 1 : i64, tpu.core_type = #tpu.core_type<tc>, window_params = [{transform_indices = @transform_0, window_bounds = array<i64: 16, 256>}, {pipeline_mode = #tpu.pipeline_mode<synchronous>, transform_indices = @transform_1, window_bounds = array<i64: 256, 128>}, {transform_indices = @transform_2, window_bounds = array<i64: 128, 128>}, {transform_indices = @transform_3, window_bounds = array<i64: 16, 128>}]} {
    %c0_i32 = arith.constant 0 : i32
    %0 = arith.cmpi eq, %arg1, %c0_i32 : i32
    %1 = arith.extui %0 : i1 to i32
    %c0_i32_0 = arith.constant 0 : i32
    %2 = arith.cmpi ne, %1, %c0_i32_0 : i32
    scf.if %2 {
      %c0_6 = arith.constant 0 : index
      %c0_7 = arith.constant 0 : index
      %7 = vector.load %arg2[%c0_6, %c0_7] : memref<16x256xf32, #tpu.memory_space<vmem>>, vector<16x256xf32>
      %c0_8 = arith.constant 0 : index
      %c0_9 = arith.constant 0 : index
      %8 = vector.load %arg3[%c0_8, %c0_9] : memref<256x128xf32, #tpu.memory_space<vmem>>, vector<256x128xf32>
      %cst_10 = arith.constant dense<0.000000e+00> : vector<16x128xf32>
      %9 = tpu.matmul %7, %8, %cst_10 {dimension_numbers = #tpu.dot_dimension_numbers<[1], [0], [0], [1], [0, 0, 1, 1], [], []>} : vector<16x256xf32>, vector<256x128xf32>, vector<16x128xf32> -> vector<16x128xf32>
      %c0_11 = arith.constant 0 : index
      %c0_12 = arith.constant 0 : index
      %10 = vector.load %arg6[%c0_11, %c0_12] : memref<16x128xf32, #tpu.memory_space<vmem>>, vector<16x128xf32>
      tpu.vector_store %arg6[%c0_11, %c0_12], %9 {strides = array<i32>} : memref<16x128xf32, #tpu.memory_space<vmem>>, vector<16x128xf32>,
    } else {
    }
    %c0 = arith.constant 0 : index
    %c0_1 = arith.constant 0 : index
    %3 = vector.load %arg6[%c0, %c0_1] : memref<16x128xf32, #tpu.memory_space<vmem>>, vector<16x128xf32>
    %c0_2 = arith.constant 0 : index
    %c0_3 = arith.constant 0 : index
    %4 = vector.load %arg4[%c0_2, %c0_3] : memref<128x128xf32, #tpu.memory_space<vmem>>, vector<128x128xf32>
    %cst = arith.constant dense<0.000000e+00> : vector<16x128xf32>
    %5 = tpu.matmul %3, %4, %cst {dimension_numbers = #tpu.dot_dimension_numbers<[1], [0], [0], [1], [0, 0, 1, 1], [], []>} : vector<16x128xf32>, vector<128x128xf32>, vector<16x128xf32> -> vector<16x128xf32>
    %c0_4 = arith.constant 0 : index
    %c0_5 = arith.constant 0 : index
    %6 = vector.load %arg5[%c0_4, %c0_5] : memref<16x128xf32, #tpu.memory_space<vmem>>, vector<16x128xf32>
    tpu.vector_store %arg5[%c0_4, %c0_5], %5 {strides = array<i32>} : memref<16x128xf32, #tpu.memory_space<vmem>>, vector<16x128xf32>,
    return
  }
  func.func @transform_0(%arg0: i32, %arg1: i32) -> (i32, i32) {
    %c0_i32 = arith.constant 0 : i32
    %c0_i32_0 = arith.constant 0 : i32
    return %arg0, %c0_i32 : i32, i32
  }
  func.func @transform_1(%arg0: i32, %arg1: i32) -> (i32, i32) {
    %c0_i32 = arith.constant 0 : i32
    %c0_i32_0 = arith.constant 0 : i32
    %c0_i32_1 = arith.constant 0 : i32
    return %c0_i32, %c0_i32_0 : i32, i32
  }
  func.func @transform_2(%arg0: i32, %arg1: i32) -> (i32, i32) {
    %c0_i32 = arith.constant 0 : i32
    %c0_i32_0 = arith.constant 0 : i32
    return %c0_i32, %arg1 : i32, i32
  }
  func.func @transform_3(%arg0: i32, %arg1: i32) -> (i32, i32) {
    %c0_i32 = arith.constant 0 : i32
    return %arg0, %arg1 : i32, i32
  }
}

</mosaic_0001>

<llo_original>
// kernel: tpu_custom_call.1
$region0: #{tpu_custom_call.1}
  #allocation0 [shape = 'u32[]', space=smem, size = 0x4, offset = 0x4, fixed_abs, tag = 'smem constant byte address 0x4 - core index']
  #allocation1 [shape = 'u32[72,128]{1,0:T(1,128)}', space=vmem, size = 0x9000, scoped, tag = 'internal scratch']
  #allocation2 [shape = 'f32[16,128]{1,0:T(8,128)}', space=vmem, size = 0x2000, scoped, tag = 'scratch operand']
  %s0 = inlined_call_operand.hbm [shape: f32[32,256], index: 0, kind: input, shape index: {}]
  %s1 = inlined_call_operand.hbm [shape: f32[256,128], index: 1, kind: input, shape index: {}]
  %s2 = inlined_call_operand.hbm [shape: f32[128,256], index: 2, kind: input, shape index: {}]
  %s3 = inlined_call_operand.hbm [shape: f32[32,256], index: 3, kind: output, shape index: {}]
  %s4 = sld [smem:[#allocation0]]
  $region61: #{tpu_custom_call.1} parent=0
    _
  %s6 = ssub.s32 1, %s4
  %s7 = scalar_select 0, %s6, %s4
  $region1: #{tpu_custom_call.1} parent=0
    #allocation3 [shape = 'u8[32768]{0}', space=vmem, size = 0x8000, scoped, tag = 'input window, operand 0']
    #allocation4 [shape = 's32[2]{0}', space=sflag, size = 0x8, scoped, tag = 'scoped memory for tpu_custom_call.1']
    #allocation5 [shape = 's32[2]{0}', space=sflag, size = 0x8, scoped, tag = 'scoped memory for tpu_custom_call.1']
    #allocation6 [shape = 'u8[131072]{0}', space=vmem, size = 0x20000, scoped, tag = 'input window, operand 1, single buffered']
    #allocation7 [shape = 's32[1]{0}', space=sflag, size = 0x4, scoped, tag = 'scoped memory for tpu_custom_call.1']
    #allocation8 [shape = 'u8[131072]{0}', space=vmem, size = 0x20000, scoped, tag = 'input window, operand 2']
    #allocation9 [shape = 'u8[16384]{0}', space=vmem, size = 0x4000, scoped, tag = 'output window, operand 0']
    %8 = vsyncpa [#allocation4], 0
    %s9 = scalar_lea.sflag [#allocation4], 1
    %10 = vsyncpa %s9, 0
    %11 = vsyncpa [#allocation7], 0
    %12 = vsyncpa [#allocation5], 0
    %s13 = scalar_lea.sflag [#allocation5], 1
    %14 = vsyncpa %s13, 0
    loop: start=0, step=1, limit=6
    $region2: #{tpu_custom_call.1} parent=1 // loop_pre_header
      _
    $region3: #{tpu_custom_call.1} parent=1 // loop_header
      %s16 = sphi 0, %s20
      %p17 = scmp.ge.s32.totalorder %s16, 6
      %s23 = sphi 0, %s35
      %s24 = sphi 0, %s31
      %s25 = sphi 0, %s23
      %s26 = sphi 0, %s24
      %s27 = sphi 0, %s25
      %s28 = sphi 0, %s26
      %s38 = sphi 0, %s40
      %s41 = sphi 0, %s38
      %s42 = sphi 0, %s41
      %s58 = sphi 0, %s42
      %s62 = sphi 0, %s62
      %s64 = sphi 0, %s62
      %s65 = sphi 0, %s64
      %s79 = sphi 0, %s65
      %s85 = sphi 0, %s87
      %s88 = sphi 0, %s85
      %s89 = sphi 0, %s88
      %s105 = sphi 0, %s89
      %s113 = sphi 0, %s115
      %s116 = sphi 0, %s113
      %s117 = sphi 0, %s116
      %s133 = sphi 0, %s117
    $region4: #{tpu_custom_call.1} parent=1 // loop_header_branch
      %19 = sbr.rel (%p17) target = $region8
    $region5: #{tpu_custom_call.1} parent=1 // loop_body
      %s21 = ssub.s32 %s16, 1
      %s22 = ssub.s32 %s16, 2
      %s29 = sadd.s32 1, %s24
      %p30 = scmp.ge.s32.totalorder %s29, 2
      %s31 = scalar_select %p30, 0, %s29
      %s32 = sadd.s32 1, %s23
      %s33 = scalar_select %p30, %s32, %s23
      %p34 = scmp.ge.s32.totalorder %s33, 2
      %s35 = scalar_select %p34, 0, %s33
      %s36 = ssub.s32 %s23, %s35
      %p37 = scmp.eq.s32.totalorder %s36, 0
      %s39 = sadd.s32 %s38, 1
      %s40 = scalar_select %p37, %s38, %s39
      %p43 = pneg %p37
      %p44 = scmp.eq.s32.totalorder %s16, 3
      %p45 = por %p43, %p44
      %p46 = scmp.ne.s32.totalorder %s38, %s41
      %p47 = scmp.eq.s32.totalorder %s16, 0
      %p48 = por %p46, %p47
      %p49 = scmp.ne.s32.totalorder %s38, %s41
      %p50 = scmp.eq.s32.totalorder %s21, 3
      %p51 = por %p49, %p50
      %p52 = scmp.ne.s32.totalorder %s41, %s42
      %p53 = scmp.eq.s32.totalorder %s21, 0
      %p54 = por %p52, %p53
      %p55 = scmp.ne.s32.totalorder %s41, %s42
      %p56 = scmp.eq.s32.totalorder %s22, 3
      %p57 = por %p55, %p56
      %p59 = scmp.ne.s32.totalorder %s42, %s58
      %p60 = scmp.eq.s32.totalorder %s22, 0
      %p61 = por %p59, %p60
      %s63 = sadd.s32 %s62, 1
      %p66 = scmp.eq.s32.totalorder %s16, 3
      %p67 = scmp.ne.s32.totalorder %s62, %s64
      %p68 = scmp.eq.s32.totalorder %s16, 0
      %p69 = por %p67, %p68
      %p70 = scmp.ne.s32.totalorder %s62, %s64
      %p71 = scmp.eq.s32.totalorder %s21, 3
      %p72 = por %p70, %p71
      %p73 = scmp.ne.s32.totalorder %s64, %s65
      %p74 = scmp.eq.s32.totalorder %s21, 0
      %p75 = por %p73, %p74
      %p76 = scmp.ne.s32.totalorder %s64, %s65
      %p77 = scmp.eq.s32.totalorder %s22, 3
      %p78 = por %p76, %p77
      %p80 = scmp.ne.s32.totalorder %s65, %s79
      %p81 = scmp.eq.s32.totalorder %s22, 0
      %p82 = por %p80, %p81
      %s83 = ssub.s32 %s24, %s31
      %p84 = scmp.eq.s32.totalorder %s83, 0
      %s86 = sadd.s32 %s85, 1
      %s87 = scalar_select %p84, %s85, %s86
      %p90 = pneg %p84
      %p91 = scmp.eq.s32.totalorder %s16, 3
      %p92 = por %p90, %p91
      %p93 = scmp.ne.s32.totalorder %s85, %s88
      %p94 = scmp.eq.s32.totalorder %s16, 0
      %p95 = por %p93, %p94
      %p96 = scmp.ne.s32.totalorder %s85, %s88
      %p97 = scmp.eq.s32.totalorder %s21, 3
      %p98 = por %p96, %p97
      %p99 = scmp.ne.s32.totalorder %s88, %s89
      %p100 = scmp.eq.s32.totalorder %s21, 0
      %p101 = por %p99, %p100
      %p102 = scmp.ne.s32.totalorder %s88, %s89
      %p103 = scmp.eq.s32.totalorder %s22, 3
      %p104 = por %p102, %p103
      %p106 = scmp.ne.s32.totalorder %s89, %s105
      %p107 = scmp.eq.s32.totalorder %s22, 0
      %p108 = por %p106, %p107
      %s109 = ssub.s32 %s23, %s35
      %s110 = ssub.s32 %s24, %s31
      %s111 = sor.u32 %s109, %s110
      %p112 = scmp.eq.s32.totalorder %s111, 0
      %s114 = sadd.s32 %s113, 1
      %s115 = scalar_select %p112, %s113, %s114
      %p118 = pneg %p112
      %p119 = scmp.eq.s32.totalorder %s16, 3
      %p120 = por %p118, %p119
      %p121 = scmp.ne.s32.totalorder %s113, %s116
      %p122 = scmp.eq.s32.totalorder %s16, 0
      %p123 = por %p121, %p122
      %p124 = scmp.ne.s32.totalorder %s113, %s116
      %p125 = scmp.eq.s32.totalorder %s21, 3
      %p126 = por %p124, %p125
      %p127 = scmp.ne.s32.totalorder %s116, %s117
      %p128 = scmp.eq.s32.totalorder %s21, 0
      %p129 = por %p127, %p128
      %p130 = scmp.ne.s32.totalorder %s116, %s117
      %p131 = scmp.eq.s32.totalorder %s22, 3
      %p132 = por %p130, %p131
      %p134 = scmp.ne.s32.totalorder %s117, %s133
      %p135 = scmp.eq.s32.totalorder %s22, 0
      %p136 = por %p134, %p135
      %p137 = scmp.le.s32.totalorder 1, %s16
      %p138 = scmp.lt.s32.totalorder %s16, 5
      %p139 = pnand %p137, %p138
      %p140 = pneg %p139
      // Predicated region
      $region9: #{tpu_custom_call.1} parent=5 // pred_check
        _
      $region10: #{tpu_custom_call.1} parent=5 // pred_check_branch
        %142 = sbr.rel (%p139) target = $region12
      $region11: #{tpu_custom_call.1} parent=5 // pred_region
        %s143 = ssub.s32 %s16, 1
        // Predicated region
        $region13: #{tpu_custom_call.1} parent=11 // pred_check
          %p144 = pneg %p75
        $region14: #{tpu_custom_call.1} parent=11 // pred_check_branch
          %146 = sbr.rel (%p144) target = $region16
        $region15: #{tpu_custom_call.1} parent=11 // pred_region
          %148 = vsyncadd [#allocation7], 0
          %s149 = sshll.u32 %s1, 4
          %s150 = int_to_ptr.hbm [resolvable:$true] %s149
          %s151 = sshll.u32 [#allocation6], 4
          %s152 = int_to_ptr.vmem [resolvable:$true] %s151
          %157 = dma.hbm_to_vmem [thread:$0]  %s150, 4096, %s152, [#allocation7], 128, 128, 8
        $region16: #{tpu_custom_call.1} parent=11 // pred_fallthru
          _
      $region12: #{tpu_custom_call.1} parent=5 // pred_fallthru
        _
      %p158 = scmp.lt.s32.totalorder %s16, 4
      // Predicated region
      $region17: #{tpu_custom_call.1} parent=5 // pred_check
        %p159 = pneg %p158
      $region18: #{tpu_custom_call.1} parent=5 // pred_check_branch
        %161 = sbr.rel (%p159) target = $region20
      $region19: #{tpu_custom_call.1} parent=5 // pred_region
        // Predicated region
        $region21: #{tpu_custom_call.1} parent=19 // pred_check
          %p162 = pneg %p48
        $region22: #{tpu_custom_call.1} parent=19 // pred_check_branch
          %164 = sbr.rel (%p162) target = $region24
        $region23: #{tpu_custom_call.1} parent=19 // pred_region
          %s165 = sand.u32 %s16, 1
          %s166 = scalar_lea.sflag [#allocation4], %s165
          %s167 = sand.u32 %s38, 1
          %s168 = smul.addr %s167, 32
          %s169 = scalar_lea.vmem [#allocation3], %s168
          %s170 = smul.u32 2, %s23
          %172 = vsyncadd %s166, 0
          %s173 = smul.addr %s170, 2
          %s174 = smul.addr %s173, 8
          %s175 = scalar_lea.hbm %s0, %s174
          %s176 = sshll.u32 %s175, 4
          %s177 = int_to_ptr.hbm [resolvable:$true] %s176
          %s178 = sshll.u32 %s169, 4
          %s179 = int_to_ptr.vmem [resolvable:$true] %s178
          %184 = dma.hbm_to_vmem [thread:$0]  %s177, 512, %s179, %s166, 256, 256, 16
        $region24: #{tpu_custom_call.1} parent=19 // pred_fallthru
          _
        // Predicated region
        $region25: #{tpu_custom_call.1} parent=19 // pred_check
          %p185 = pneg %p95
        $region26: #{tpu_custom_call.1} parent=19 // pred_check_branch
          %187 = sbr.rel (%p185) target = $region28
        $region27: #{tpu_custom_call.1} parent=19 // pred_region
          %s188 = sand.u32 %s16, 1
          %s189 = scalar_lea.sflag [#allocation4], %s188
          %s190 = sand.u32 %s85, 1
          %s191 = smul.addr %s190, 128
          %s192 = scalar_lea.vmem [#allocation8], %s191
          %194 = vsyncadd %s189, 0
          %s195 = smul.addr %s24, 8
          %s196 = scalar_lea.hbm %s2, %s195
          %s197 = sshll.u32 %s196, 4
          %s198 = int_to_ptr.hbm [resolvable:$true] %s197
          %s199 = sshll.u32 %s192, 4
          %s200 = int_to_ptr.vmem [resolvable:$true] %s199
          %205 = dma.hbm_to_vmem [thread:$0]  %s198, 2048, %s200, %s189, 256, 128, 8
        $region28: #{tpu_custom_call.1} parent=19 // pred_fallthru
          _
      $region20: #{tpu_custom_call.1} parent=5 // pred_fallthru
        _
      %p206 = scmp.le.s32.totalorder 1, %s16
      %p207 = scmp.lt.s32.totalorder %s16, 5
      %p208 = pnand %p206, %p207
      %p209 = pneg %p208
      // Predicated region
      $region29: #{tpu_custom_call.1} parent=5 // pred_check
        _
      $region30: #{tpu_custom_call.1} parent=5 // pred_check_branch
        %211 = sbr.rel (%p208) target = $region32
      $region31: #{tpu_custom_call.1} parent=5 // pred_region
        %s212 = ssub.s32 %s16, 1
        %s213 = sand.u32 %s21, 1
        %s214 = scalar_lea.sflag [#allocation4], %s213
        %s215 = sand.u32 %s41, 1
        %s216 = smul.addr %s215, 32
        %s217 = scalar_lea.vmem [#allocation3], %s216
        // Predicated region
        $region33: #{tpu_custom_call.1} parent=31 // pred_check
          %p218 = pneg %p54
        $region34: #{tpu_custom_call.1} parent=31 // pred_check_branch
          %220 = sbr.rel (%p218) target = $region36
        $region35: #{tpu_custom_call.1} parent=31 // pred_region
          %222 = dma.done %s214, 512
        $region36: #{tpu_custom_call.1} parent=31 // pred_fallthru
          _
        // Predicated region
        $region37: #{tpu_custom_call.1} parent=31 // pred_check
          %p223 = pneg %p75
        $region38: #{tpu_custom_call.1} parent=31 // pred_check_branch
          %225 = sbr.rel (%p223) target = $region40
        $region39: #{tpu_custom_call.1} parent=31 // pred_region
          %227 = dma.done [#allocation7], 4096
        $region40: #{tpu_custom_call.1} parent=31 // pred_fallthru
          _
        %s228 = sand.u32 %s21, 1
        %s229 = scalar_lea.sflag [#allocation4], %s228
        %s230 = sand.u32 %s88, 1
        %s231 = smul.addr %s230, 128
        %s232 = scalar_lea.vmem [#allocation8], %s231
        // Predicated region
        $region41: #{tpu_custom_call.1} parent=31 // pred_check
          %p233 = pneg %p101
        $region42: #{tpu_custom_call.1} parent=31 // pred_check_branch
          %235 = sbr.rel (%p233) target = $region44
        $region43: #{tpu_custom_call.1} parent=31 // pred_region
          %237 = dma.done %s229, 2048
        $region44: #{tpu_custom_call.1} parent=31 // pred_fallthru
          _
        %s238 = sand.u32 %s21, 1
        %s239 = scalar_lea.sflag [#allocation4], %s238
        %s240 = sand.u32 %s41, 1
        %s241 = smul.addr %s240, 32
        %s242 = scalar_lea.vmem [#allocation3], %s241
        %p243 = pneg %p54
        %p244 = pneg %p51
        %p245 = pneg %p75
        %p246 = pneg %p72
        %s247 = sand.u32 %s21, 1
        %s248 = scalar_lea.sflag [#allocation4], %s247
        %s249 = sand.u32 %s88, 1
        %s250 = smul.addr %s249, 128
        %s251 = scalar_lea.vmem [#allocation8], %s250
        %p252 = pneg %p101
        %p253 = pneg %p98
        %p254 = pneg %p129
        %p255 = pneg %p126
        %s256 = sand.u32 %s116, 1
        %s257 = scalar_lea.sflag [#allocation5], %s256
        %s258 = sand.u32 %s116, 1
        %s259 = smul.addr %s258, 16
        %s260 = scalar_lea.vmem [#allocation9], %s259
        %s261 = smul.u32 2, %s25
        %s262 = smul.u32 2, %s25
        %p263 = scmp.eq.s32.totalorder %s26, 0
        // Predicated region
        $region45: #{tpu_custom_call.1} parent=31 // pred_check
          %p264 = pneg %p263
        $region46: #{tpu_custom_call.1} parent=31 // pred_check_branch
          %266 = sbr.rel (%p264) target = $region48
        $region47: #{tpu_custom_call.1} parent=31 // pred_region
          %v267 = vld [vmem:[%s217] sm:$0xff]
          %v268 = vld [vmem:[%s217 + $0x8] sm:$0xff]
          %v269 = vld [vmem:[%s217 + $0x10] sm:$0xff]
          %v270 = vld [vmem:[%s217 + $0x18] sm:$0xff]
          %v271 = vld [vmem:[#allocation6] sm:$0xff]
          %v272 = vld [vmem:[#allocation6 + $0x8] sm:$0xff]
          %v273 = vld [vmem:[#allocation6 + $0x10] sm:$0xff]
          %v274 = vld [vmem:[#allocation6 + $0x18] sm:$0xff]
          %v275 = vld [vmem:[#allocation6 + $0x20] sm:$0xff]
          %v276 = vld [vmem:[#allocation6 + $0x28] sm:$0xff]
          %v277 = vld [vmem:[#allocation6 + $0x30] sm:$0xff]
          %v278 = vld [vmem:[#allocation6 + $0x38] sm:$0xff]
          %v279 = vld [vmem:[#allocation6 + $0x40] sm:$0xff]
          %v280 = vld [vmem:[#allocation6 + $0x48] sm:$0xff]
          %v281 = vld [vmem:[#allocation6 + $0x50] sm:$0xff]
          %v282 = vld [vmem:[#allocation6 + $0x58] sm:$0xff]
          %v283 = vld [vmem:[#allocation6 + $0x60] sm:$0xff]
          %v284 = vld [vmem:[#allocation6 + $0x68] sm:$0xff]
          %v285 = vld [vmem:[#allocation6 + $0x70] sm:$0xff]
          %v286 = vld [vmem:[#allocation6 + $0x78] sm:$0xff]
          %v287 = vld [vmem:[#allocation6 + $0x80] sm:$0xff]
          %v288 = vld [vmem:[#allocation6 + $0x88] sm:$0xff]
          %v289 = vld [vmem:[#allocation6 + $0x90] sm:$0xff]
          %v290 = vld [vmem:[#allocation6 + $0x98] sm:$0xff]
          %v291 = vld [vmem:[#allocation6 + $0xa0] sm:$0xff]
          %v292 = vld [vmem:[#allocation6 + $0xa8] sm:$0xff]
          %v293 = vld [vmem:[#allocation6 + $0xb0] sm:$0xff]
          %v294 = vld [vmem:[#allocation6 + $0xb8] sm:$0xff]
          %v295 = vld [vmem:[#allocation6 + $0xc0] sm:$0xff]
          %v296 = vld [vmem:[#allocation6 + $0xc8] sm:$0xff]
          %v297 = vld [vmem:[#allocation6 + $0xd0] sm:$0xff]
          %v298 = vld [vmem:[#allocation6 + $0xd8] sm:$0xff]
          %v299 = vld [vmem:[#allocation6 + $0xe0] sm:$0xff]
          %v300 = vld [vmem:[#allocation6 + $0xe8] sm:$0xff]
          %v301 = vld [vmem:[#allocation6 + $0xf0] sm:$0xff]
          %v302 = vld [vmem:[#allocation6 + $0xf8] sm:$0xff]
          %303 = vmatpush.msra.mxu0 %v286
          %304 = vmatpush.msra.mxu0 %v285
          %305 = vmatpush.msra.mxu0 %v284
          %306 = vmatpush.msra.mxu0 %v283
          %307 = vmatpush.msra.mxu0 %v282
          %308 = vmatpush.msra.mxu0 %v281
          %309 = vmatpush.msra.mxu0 %v280
          %310 = vmatpush.msra.mxu0 %v279
          %311 = vmatpush.msra.mxu0 %v278
          %312 = vmatpush.msra.mxu0 %v277
          %313 = vmatpush.msra.mxu0 %v276
          %314 = vmatpush.msra.mxu0 %v275
          %315 = vmatpush.msra.mxu0 %v274
          %316 = vmatpush.msra.mxu0 %v273
          %317 = vmatpush.msra.mxu0 %v272
          %318 = vmatpush.msra.mxu0 %v271
          %319 = vmatmul.f32.gmra.mxu0 %v267
          %v320 = vpop.f32.mrf.mxu0
          %v321 = vadd.f32 0.0, %v320
          %322 = vmatmul.f32.gmra.mxu0 %v269
          %v323 = vpop.f32.mrf.mxu0
          %v324 = vadd.f32 0.0, %v323
          %325 = vdwg.mxu0
          %326 = vmatpush.msra.mxu0 %v302
          %327 = vmatpush.msra.mxu0 %v301
          %328 = vmatpush.msra.mxu0 %v300
          %329 = vmatpush.msra.mxu0 %v299
          %330 = vmatpush.msra.mxu0 %v298
          %331 = vmatpush.msra.mxu0 %v297
          %332 = vmatpush.msra.mxu0 %v296
          %333 = vmatpush.msra.mxu0 %v295
          %334 = vmatpush.msra.mxu0 %v294
          %335 = vmatpush.msra.mxu0 %v293
          %336 = vmatpush.msra.mxu0 %v292
          %337 = vmatpush.msra.mxu0 %v291
          %338 = vmatpush.msra.mxu0 %v290
          %339 = vmatpush.msra.mxu0 %v289
          %340 = vmatpush.msra.mxu0 %v288
          %341 = vmatpush.msra.mxu0 %v287
          %342 = vmatmul.f32.gmra.mxu0 %v268
          %v343 = vpop.f32.mrf.mxu0
          %v344 = vadd.f32 %v321, %v343
          %345 = vmatmul.f32.gmra.mxu0 %v270
          %v346 = vpop.f32.mrf.mxu0
          %v347 = vadd.f32 %v324, %v346
          %348 = vdwg.mxu0
          %349 = vst [vmem:[#allocation2] sm:$0xff] %v344
          %350 = vst [vmem:[#allocation2 + $0x8] sm:$0xff] %v347
        $region48: #{tpu_custom_call.1} parent=31 // pred_fallthru
          _
        %v351 = vld [vmem:[#allocation2] sm:$0xff]
        %v352 = vld [vmem:[#allocation2 + $0x8] sm:$0xff]
        %v353 = vld [vmem:[%s232] sm:$0xff]
        %v354 = vld [vmem:[%s232 + $0x8] sm:$0xff]
        %v355 = vld [vmem:[%s232 + $0x10] sm:$0xff]
        %v356 = vld [vmem:[%s232 + $0x18] sm:$0xff]
        %v357 = vld [vmem:[%s232 + $0x20] sm:$0xff]
        %v358 = vld [vmem:[%s232 + $0x28] sm:$0xff]
        %v359 = vld [vmem:[%s232 + $0x30] sm:$0xff]
        %v360 = vld [vmem:[%s232 + $0x38] sm:$0xff]
        %v361 = vld [vmem:[%s232 + $0x40] sm:$0xff]
        %v362 = vld [vmem:[%s232 + $0x48] sm:$0xff]
        %v363 = vld [vmem:[%s232 + $0x50] sm:$0xff]
        %v364 = vld [vmem:[%s232 + $0x58] sm:$0xff]
        %v365 = vld [vmem:[%s232 + $0x60] sm:$0xff]
        %v366 = vld [vmem:[%s232 + $0x68] sm:$0xff]
        %v367 = vld [vmem:[%s232 + $0x70] sm:$0xff]
        %v368 = vld [vmem:[%s232 + $0x78] sm:$0xff]
        %369 = vmatpush.msra.mxu0 %v368
        %370 = vmatpush.msra.mxu0 %v367
        %371 = vmatpush.msra.mxu0 %v366
        %372 = vmatpush.msra.mxu0 %v365
        %373 = vmatpush.msra.mxu0 %v364
        %374 = vmatpush.msra.mxu0 %v363
        %375 = vmatpush.msra.mxu0 %v362
        %376 = vmatpush.msra.mxu0 %v361
        %377 = vmatpush.msra.mxu0 %v360
        %378 = vmatpush.msra.mxu0 %v359
        %379 = vmatpush.msra.mxu0 %v358
        %380 = vmatpush.msra.mxu0 %v357
        %381 = vmatpush.msra.mxu0 %v356
        %382 = vmatpush.msra.mxu0 %v355
        %383 = vmatpush.msra.mxu0 %v354
        %384 = vmatpush.msra.mxu0 %v353
        %385 = vmatmul.f32.gmra.mxu0 %v351
        %v386 = vpop.f32.mrf.mxu0
        %v387 = vadd.f32 0.0, %v386
        %388 = vmatmul.f32.gmra.mxu0 %v352
        %v389 = vpop.f32.mrf.mxu0
        %v390 = vadd.f32 0.0, %v389
        %391 = vdwg.mxu0
        %392 = vst [vmem:[%s260] sm:$0xff] %v387
        %393 = vst [vmem:[%s260 + $0x8] sm:$0xff] %v390
        %s394 = sand.u32 %s116, 1
        %s395 = scalar_lea.sflag [#allocation5], %s394
        %s396 = sand.u32 %s116, 1
        %s397 = smul.addr %s396, 16
        %s398 = scalar_lea.vmem [#allocation9], %s397
        // Predicated region
        $region49: #{tpu_custom_call.1} parent=31 // pred_check
          %p399 = pneg %p126
        $region50: #{tpu_custom_call.1} parent=31 // pred_check_branch
          %401 = sbr.rel (%p399) target = $region52
        $region51: #{tpu_custom_call.1} parent=31 // pred_region
          %s402 = smul.u32 2, %s25
          %404 = vsyncadd %s395, 0
          %s405 = smul.addr %s402, 2
          %s406 = sadd.s32 %s26, %s405
          %s407 = smul.addr %s406, 8
          %s408 = scalar_lea.hbm %s3, %s407
          %s409 = sshll.u32 %s398, 4
          %s410 = int_to_ptr.vmem [resolvable:$true] %s409
          %s411 = sshll.u32 %s408, 4
          %s412 = int_to_ptr.hbm [resolvable:$true] %s411
          %417 = dma.vmem_to_hbm [thread:$0]  %s410, 256, %s412, %s395, 128, 256, 8
        $region52: #{tpu_custom_call.1} parent=31 // pred_fallthru
          _
      $region32: #{tpu_custom_call.1} parent=5 // pred_fallthru
        _
      %p418 = scmp.le.s32.totalorder 2, %s16
      // Predicated region
      $region53: #{tpu_custom_call.1} parent=5 // pred_check
        %p419 = pneg %p418
      $region54: #{tpu_custom_call.1} parent=5 // pred_check_branch
        %421 = sbr.rel (%p419) target = $region56
      $region55: #{tpu_custom_call.1} parent=5 // pred_region
        %s422 = ssub.s32 %s16, 2
        // Predicated region
        $region57: #{tpu_custom_call.1} parent=55 // pred_check
          %p423 = pneg %p132
        $region58: #{tpu_custom_call.1} parent=55 // pred_check_branch
          %425 = sbr.rel (%p423) target = $region60
        $region59: #{tpu_custom_call.1} parent=55 // pred_region
          %s426 = sand.u32 %s117, 1
          %s427 = scalar_lea.sflag [#allocation5], %s426
          %s428 = sand.u32 %s117, 1
          %s429 = smul.addr %s428, 16
          %s430 = scalar_lea.vmem [#allocation9], %s429
          %432 = dma.done %s427, 256
        $region60: #{tpu_custom_call.1} parent=55 // pred_fallthru
          _
      $region56: #{tpu_custom_call.1} parent=5 // pred_fallthru
        _
    $region6: #{tpu_custom_call.1} parent=1 // loop_footer
      %s20 = sadd.s32 1, %s16
    $region7: #{tpu_custom_call.1} parent=1 // loop_footer_branch
      %15 = sbr.rel target = $region3
    $region8: #{tpu_custom_call.1} parent=1 // loop_exit
      _
    %433 = vsyncpa [#allocation4], 1
    %s434 = scalar_lea.sflag [#allocation4], 1
    %435 = vsyncpa %s434, 1
    %436 = vsyncpa [#allocation7], 1
    %437 = vsyncpa [#allocation5], 1
    %s438 = scalar_lea.sflag [#allocation5], 1
    %439 = vsyncpa %s438, 1

</llo_original>
